<compile_context>
chip_gen: v6e
topology: v6e:2x2x1
jax: 0.10.0
libtpu: 0.0.40
codegen_flags: <defaults>
</compile_context>

<pallas_src>
import functools

import jax
import jax.numpy as jnp
import numpy as np
from jax.experimental import pallas as pl
from jax.experimental.pallas import tpu as pltpu

_BN_EPS = 1e-5


def transition_kernel(x_ref, w_ref, b_ref, pool_ref, o_ref):
    # x_ref    : (NB, Cin, HW)   bf16  slab of images; channels on sublanes, flat spatial on lanes
    # w_ref    : (Cout, Cin)     bf16  BN-folded 1x1 conv weight
    # b_ref    : (Cout, 1)       f32   BN-folded per-output-channel bias
    # pool_ref : (HW, HWo)       bf16  2x2 stride-2 average-pool matrix
    # o_ref    : (NB, Cout, HWo)
    w = w_ref[...]
    pool = pool_ref[...]
    b = b_ref[...]
    nb = x_ref.shape[0]
    # Static unroll over the images of the slab: each iteration is a pair of
    # plain 2-D MXU matmuls with f32 accumulation.  NB is small (<= 16), so
    # the unroll is cheap and keeps lowering simple.
    for i in range(nb):
        # 1x1 conv with BN folded into the weight.
        y = jnp.dot(w, x_ref[i], preferred_element_type=jnp.float32)          # (Cout, HW) f32
        # 2x2 average pool over the flat spatial axis + folded BN bias.
        o_ref[i] = (jnp.dot(y.astype(pool.dtype), pool,
                            preferred_element_type=jnp.float32) + b).astype(o_ref.dtype)


def make_pool_matrix(H, W, dtype=jnp.bfloat16):
    """(H*W, H/2*W/2) matrix averaging non-overlapping 2x2 windows (row-major)."""
    Ho, Wo = H // 2, W // 2
    rows = np.arange(H * W)
    h, w = rows // W, rows % W
    cols = (h // 2) * Wo + (w // 2)
    P = np.zeros((H * W, Ho * Wo), dtype=np.float32)
    P[rows, cols] = 0.25                                   # exact in bf16
    return jnp.asarray(P, dtype=dtype)


def _pick_block_batch(N, per_image_bytes, slab_budget_bytes=4 << 20, max_nb=16):
    """Images per grid step: VMEM-budgeted, divisor of N, keeps >= 2 grid steps."""
    cap = max(1, slab_budget_bytes // max(per_image_bytes, 1))
    cap = min(cap, max_nb)                                  # bound the static unroll
    if N >= 2:
        cap = min(cap, N // 2)                              # >= 2 steps -> both TCs busy
    cap = max(int(cap), 1)
    nb = 1
    for d in range(1, min(cap, N) + 1):
        if N % d == 0:
            nb = d
    return nb


@jax.jit
def transition_forward(x_nchw, gamma, beta, w_oi):
    N, Cin, H, W = x_nchw.shape
    Cout = w_oi.shape[0]
    HW, HWo = H * W, (H // 2) * (W // 2)

    # Training-mode BatchNorm statistics (biased variance) from a single fused
    # pass over x (sum and sum-of-squares reduce together under jit), folded
    # into the conv weight / bias.
    cnt = float(N * H * W)
    s1 = jnp.sum(x_nchw, axis=(0, 2, 3))
    s2 = jnp.sum(x_nchw * x_nchw, axis=(0, 2, 3))
    mean = s1 / cnt
    var = jnp.maximum(s2 / cnt - mean * mean, 0.0)          # biased variance
    scale = gamma / jnp.sqrt(var + _BN_EPS)                 # (Cin,)
    shift = beta - mean * scale                             # (Cin,)
    w_folded = (w_oi * scale[None, :]).astype(jnp.bfloat16)  # (Cout, Cin) bf16
    b_folded = (w_oi @ shift).reshape(Cout, 1)                # (Cout, 1)   f32

    # bf16 MXU operands: halves the kernel's x HBM read; the cast and the
    # (free) NCHW -> (N, Cin, HW) reshape fuse with the stats pass under jit.
    x = x_nchw.astype(jnp.bfloat16).reshape(N, Cin, HW)
    pool = make_pool_matrix(H, W)                            # (HW, HWo) bf16

    NB = _pick_block_batch(N, Cin * HW * 2)                  # bf16 bytes per image
    grid = (N // NB,)

    out = pl.pallas_call(
        transition_kernel,
        out_shape=jax.ShapeDtypeStruct((N, Cout, HWo), x_nchw.dtype),
        grid_spec=pltpu.PrefetchScalarGridSpec(
            num_scalar_prefetch=0,
            grid=grid,
            in_specs=[
                pl.BlockSpec((NB, Cin, HW), lambda n: (n, 0, 0)),   # image slab
                pl.BlockSpec((Cout, Cin), lambda n: (0, 0)),        # folded conv weight
                pl.BlockSpec((Cout, 1), lambda n: (0, 0)),          # folded bias
                pl.BlockSpec((HW, HWo), lambda n: (0, 0)),          # pool matrix
            ],
            out_specs=pl.BlockSpec((NB, Cout, HWo), lambda n: (n, 0, 0)),
        ),
        compiler_params=pltpu.CompilerParams(
            dimension_semantics=("parallel",),
            vmem_limit_bytes=32 * 1024 * 1024,
        ),
    )(x, w_folded, b_folded, pool)

    # (N, Cout, HWo) -> (N, Cout, H/2, W/2): free reshape, already NCHW.
    return out.reshape(N, Cout, H // 2, W // 2)


def reference(x, gamma, beta, w_oi, eps=_BN_EPS):
    mean = jnp.mean(x, axis=(0, 2, 3), keepdims=True)
    var = jnp.var(x, axis=(0, 2, 3), keepdims=True)
    xn = (x - mean) / jnp.sqrt(var + eps) * gamma[None, :, None, None] \
        + beta[None, :, None, None]
    y = jnp.einsum('oc,nchw->nohw', w_oi, xn)
    N, Co, H, W = y.shape
    return y.reshape(N, Co, H // 2, 2, W // 2, 2).mean(axis=(3, 5))


if __name__ == "__main__":
    key = jax.random.PRNGKey(0)
    k1, k2, k3, k4 = jax.random.split(key, 4)

    N, Cin, H, W = 2, 32, 16, 16       # in_channels=32
    Cout = 16                          # out_channels=16 (transition halves channels)

    x = jax.random.normal(k1, (N, Cin, H, W), dtype=jnp.float32)
    gamma = 1.0 + 0.1 * jax.random.normal(k2, (Cin,), dtype=jnp.float32)      # BN weight
    beta = 0.1 * jax.random.normal(k3, (Cin,), dtype=jnp.float32)             # BN bias
    w = jax.random.normal(k4, (Cout, Cin), dtype=jnp.float32) / np.sqrt(Cin)  # 1x1 conv weight

    out = jax.block_until_ready(transition_forward(x, gamma, beta, w))
    assert out.shape == (N, Cout, H // 2, W // 2)

    ref = reference(x, gamma, beta, w)
    # bf16 MXU operands (f32 accumulation) -> loosened tolerance vs. the f32 reference.
    np.testing.assert_allclose(np.asarray(out), np.asarray(ref), atol=5e-2, rtol=5e-2)

    print("KERNEL_OK")
</pallas_src>

<mosaic_0001>
module attributes {stable_mosaic.version = 11 : i64} {
  func.func @transition_kernel(%arg0: i32, %arg1: memref<1x32x256xbf16, #tpu.memory_space<vmem>>, %arg2: memref<16x32xbf16, #tpu.memory_space<vmem>>, %arg3: memref<16x1xf32, #tpu.memory_space<vmem>>, %arg4: memref<256x64xbf16, #tpu.memory_space<vmem>>, %arg5: memref<1x16x64xf32, #tpu.memory_space<vmem>>) attributes {dimension_semantics = [#tpu.dimension_semantics<parallel>], iteration_bounds = array<i64: 2>, scalar_prefetch = 0 : i64, scratch_operands = 0 : i64, tpu.core_type = #tpu.core_type<tc>, window_params = [{transform_indices = @transform_0, window_bounds = array<i64: 1, 32, 256>}, {pipeline_mode = #tpu.pipeline_mode<synchronous>, transform_indices = @transform_1, window_bounds = array<i64: 16, 32>}, {pipeline_mode = #tpu.pipeline_mode<synchronous>, transform_indices = @transform_2, window_bounds = array<i64: 16, 1>}, {pipeline_mode = #tpu.pipeline_mode<synchronous>, transform_indices = @transform_3, window_bounds = array<i64: 256, 64>}, {transform_indices = @transform_4, window_bounds = array<i64: 1, 16, 64>}]} {
    %c0 = arith.constant 0 : index
    %c0_0 = arith.constant 0 : index
    %0 = vector.load %arg2[%c0, %c0_0] : memref<16x32xbf16, #tpu.memory_space<vmem>>, vector<16x32xbf16>
    %c0_1 = arith.constant 0 : index
    %c0_2 = arith.constant 0 : index
    %1 = vector.load %arg4[%c0_1, %c0_2] : memref<256x64xbf16, #tpu.memory_space<vmem>>, vector<256x64xbf16>
    %c0_3 = arith.constant 0 : index
    %c0_4 = arith.constant 0 : index
    %2 = vector.load %arg3[%c0_3, %c0_4] : memref<16x1xf32, #tpu.memory_space<vmem>>, vector<16x1xf32>
    %c0_5 = arith.constant 0 : index
    %c0_6 = arith.constant 0 : index
    %c0_7 = arith.constant 0 : index
    %3 = vector.load %arg1[%c0_5, %c0_6, %c0_7] : memref<1x32x256xbf16, #tpu.memory_space<vmem>>, vector<1x32x256xbf16>
    %4 = vector.shape_cast %3 : vector<1x32x256xbf16> to vector<32x256xbf16>
    %cst = arith.constant dense<0.000000e+00> : vector<16x256xf32>
    %5 = tpu.matmul %0, %4, %cst {dimension_numbers = #tpu.dot_dimension_numbers<[1], [0], [0], [1], [0, 0, 1, 1], [], []>} : vector<16x32xbf16>, vector<32x256xbf16>, vector<16x256xf32> -> vector<16x256xf32>
    %6 = arith.truncf %5 : vector<16x256xf32> to vector<16x256xbf16>
    %cst_8 = arith.constant dense<0.000000e+00> : vector<16x64xf32>
    %7 = tpu.matmul %6, %1, %cst_8 {dimension_numbers = #tpu.dot_dimension_numbers<[1], [0], [0], [1], [0, 0, 1, 1], [], []>} : vector<16x256xbf16>, vector<256x64xbf16>, vector<16x64xf32> -> vector<16x64xf32>
    %8 = vector.broadcast %2 : vector<16x1xf32> to vector<16x64xf32>
    %9 = arith.addf %7, %8 : vector<16x64xf32>
    %c0_9 = arith.constant 0 : index
    %c0_10 = arith.constant 0 : index
    %c0_11 = arith.constant 0 : index
    %10 = vector.load %arg5[%c0_9, %c0_10, %c0_11] : memref<1x16x64xf32, #tpu.memory_space<vmem>>, vector<1x16x64xf32>
    %11 = vector.shape_cast %10 : vector<1x16x64xf32> to vector<16x64xf32>
    %12 = vector.shape_cast %9 : vector<16x64xf32> to vector<1x16x64xf32>
    tpu.vector_store %arg5[%c0_9, %c0_10, %c0_11], %12 {strides = array<i32>} : memref<1x16x64xf32, #tpu.memory_space<vmem>>, vector<1x16x64xf32>,
    return
  }
  func.func @transform_0(%arg0: i32) -> (i32, i32, i32) {
    %c0_i32 = arith.constant 0 : i32
    %c0_i32_0 = arith.constant 0 : i32
    %c0_i32_1 = arith.constant 0 : i32
    return %arg0, %c0_i32, %c0_i32_0 : i32, i32, i32
  }
  func.func @transform_1(%arg0: i32) -> (i32, i32) {
    %c0_i32 = arith.constant 0 : i32
    %c0_i32_0 = arith.constant 0 : i32
    %c0_i32_1 = arith.constant 0 : i32
    return %c0_i32, %c0_i32_0 : i32, i32
  }
  func.func @transform_2(%arg0: i32) -> (i32, i32) {
    %c0_i32 = arith.constant 0 : i32
    %c0_i32_0 = arith.constant 0 : i32
    %c0_i32_1 = arith.constant 0 : i32
    return %c0_i32, %c0_i32_0 : i32, i32
  }
  func.func @transform_3(%arg0: i32) -> (i32, i32) {
    %c0_i32 = arith.constant 0 : i32
    %c0_i32_0 = arith.constant 0 : i32
    %c0_i32_1 = arith.constant 0 : i32
    return %c0_i32, %c0_i32_0 : i32, i32
  }
  func.func @transform_4(%arg0: i32) -> (i32, i32, i32) {
    %c0_i32 = arith.constant 0 : i32
    %c0_i32_0 = arith.constant 0 : i32
    %c0_i32_1 = arith.constant 0 : i32
    return %arg0, %c0_i32, %c0_i32_0 : i32, i32, i32
  }
}

</mosaic_0001>

<llo_original>
// kernel: transition_forward.1
$region0: #{transition_forward.1}
  #allocation0 [shape = 'u32[]', space=smem, size = 0x4, offset = 0x4, fixed_abs, tag = 'smem constant byte address 0x4 - core index']
  #allocation1 [shape = 'u32[144,128]{1,0:T(1,128)}', space=vmem, size = 0x12000, scoped, tag = 'internal scratch']
  %s0 = inlined_call_operand.vmem [shape: bf16[2,32,256], index: 0, kind: input, shape index: {}]
  %s1 = inlined_call_operand.vmem [shape: bf16[16,32], index: 1, kind: input, shape index: {}]
  %s2 = inlined_call_operand.vmem [shape: f32[16,1], index: 2, kind: input, shape index: {}]
  %s3 = inlined_call_operand.vmem [shape: bf16[256,64], index: 3, kind: input, shape index: {}]
  %s4 = inlined_call_operand.vmem [shape: f32[2,16,64], index: 4, kind: output, shape index: {}]
  %s5 = sld [smem:[#allocation0]]
  $region49: #{transition_forward.1} parent=0
    _
  %s7 = ssub.s32 1, %s5
  %s8 = scalar_select 0, %s7, %s5
  loop: start=0, step=1, limit=4
  $region2: #{transition_forward.1} parent=0 // loop_pre_header
    _
  $region3: #{transition_forward.1} parent=0 // loop_header
    %s10 = sphi 0, %s14
    %p11 = scmp.ge.s32.totalorder %s10, 4
    %s20 = sphi 0, %s22
    %s23 = sphi 0, %s20
    %s24 = sphi 0, %s23
    %s40 = sphi 0, %s24
    %s44 = sphi 0, %s44
    %s46 = sphi 0, %s44
    %s47 = sphi 0, %s46
    %s61 = sphi 0, %s47
    %s65 = sphi 0, %s65
    %s67 = sphi 0, %s65
    %s68 = sphi 0, %s67
    %s82 = sphi 0, %s68
    %s86 = sphi 0, %s86
    %s88 = sphi 0, %s86
    %s89 = sphi 0, %s88
    %s103 = sphi 0, %s89
    %s109 = sphi 0, %s111
    %s112 = sphi 0, %s109
    %s113 = sphi 0, %s112
    %s129 = sphi 0, %s113
  $region4: #{transition_forward.1} parent=0 // loop_header_branch
    %13 = sbr.rel (%p11) target = $region8
  $region5: #{transition_forward.1} parent=0 // loop_body
    %s15 = ssub.s32 %s10, 1
    %s16 = ssub.s32 %s10, 2
    %s17 = sadd.s32 %s10, 1
    %s18 = ssub.s32 %s10, %s17
    %p19 = scmp.eq.s32.totalorder %s18, 0
    %s21 = sadd.s32 %s20, 1
    %s22 = scalar_select %p19, %s20, %s21
    %p25 = pneg %p19
    %p26 = scmp.eq.s32.totalorder %s10, 1
    %p27 = por %p25, %p26
    %p28 = scmp.ne.s32.totalorder %s20, %s23
    %p29 = scmp.eq.s32.totalorder %s10, 0
    %p30 = por %p28, %p29
    %p31 = scmp.ne.s32.totalorder %s20, %s23
    %p32 = scmp.eq.s32.totalorder %s15, 1
    %p33 = por %p31, %p32
    %p34 = scmp.ne.s32.totalorder %s23, %s24
    %p35 = scmp.eq.s32.totalorder %s15, 0
    %p36 = por %p34, %p35
    %p37 = scmp.ne.s32.totalorder %s23, %s24
    %p38 = scmp.eq.s32.totalorder %s16, 1
    %p39 = por %p37, %p38
    %p41 = scmp.ne.s32.totalorder %s24, %s40
    %p42 = scmp.eq.s32.totalorder %s16, 0
    %p43 = por %p41, %p42
    %s45 = sadd.s32 %s44, 1
    %p48 = scmp.eq.s32.totalorder %s10, 1
    %p49 = scmp.ne.s32.totalorder %s44, %s46
    %p50 = scmp.eq.s32.totalorder %s10, 0
    %p51 = por %p49, %p50
    %p52 = scmp.ne.s32.totalorder %s44, %s46
    %p53 = scmp.eq.s32.totalorder %s15, 1
    %p54 = por %p52, %p53
    %p55 = scmp.ne.s32.totalorder %s46, %s47
    %p56 = scmp.eq.s32.totalorder %s15, 0
    %p57 = por %p55, %p56
    %p58 = scmp.ne.s32.totalorder %s46, %s47
    %p59 = scmp.eq.s32.totalorder %s16, 1
    %p60 = por %p58, %p59
    %p62 = scmp.ne.s32.totalorder %s47, %s61
    %p63 = scmp.eq.s32.totalorder %s16, 0
    %p64 = por %p62, %p63
    %s66 = sadd.s32 %s65, 1
    %p69 = scmp.eq.s32.totalorder %s10, 1
    %p70 = scmp.ne.s32.totalorder %s65, %s67
    %p71 = scmp.eq.s32.totalorder %s10, 0
    %p72 = por %p70, %p71
    %p73 = scmp.ne.s32.totalorder %s65, %s67
    %p74 = scmp.eq.s32.totalorder %s15, 1
    %p75 = por %p73, %p74
    %p76 = scmp.ne.s32.totalorder %s67, %s68
    %p77 = scmp.eq.s32.totalorder %s15, 0
    %p78 = por %p76, %p77
    %p79 = scmp.ne.s32.totalorder %s67, %s68
    %p80 = scmp.eq.s32.totalorder %s16, 1
    %p81 = por %p79, %p80
    %p83 = scmp.ne.s32.totalorder %s68, %s82
    %p84 = scmp.eq.s32.totalorder %s16, 0
    %p85 = por %p83, %p84
    %s87 = sadd.s32 %s86, 1
    %p90 = scmp.eq.s32.totalorder %s10, 1
    %p91 = scmp.ne.s32.totalorder %s86, %s88
    %p92 = scmp.eq.s32.totalorder %s10, 0
    %p93 = por %p91, %p92
    %p94 = scmp.ne.s32.totalorder %s86, %s88
    %p95 = scmp.eq.s32.totalorder %s15, 1
    %p96 = por %p94, %p95
    %p97 = scmp.ne.s32.totalorder %s88, %s89
    %p98 = scmp.eq.s32.totalorder %s15, 0
    %p99 = por %p97, %p98
    %p100 = scmp.ne.s32.totalorder %s88, %s89
    %p101 = scmp.eq.s32.totalorder %s16, 1
    %p102 = por %p100, %p101
    %p104 = scmp.ne.s32.totalorder %s89, %s103
    %p105 = scmp.eq.s32.totalorder %s16, 0
    %p106 = por %p104, %p105
    %s107 = ssub.s32 %s10, %s17
    %p108 = scmp.eq.s32.totalorder %s107, 0
    %s110 = sadd.s32 %s109, 1
    %s111 = scalar_select %p108, %s109, %s110
    %p114 = pneg %p108
    %p115 = scmp.eq.s32.totalorder %s10, 1
    %p116 = por %p114, %p115
    %p117 = scmp.ne.s32.totalorder %s109, %s112
    %p118 = scmp.eq.s32.totalorder %s10, 0
    %p119 = por %p117, %p118
    %p120 = scmp.ne.s32.totalorder %s109, %s112
    %p121 = scmp.eq.s32.totalorder %s15, 1
    %p122 = por %p120, %p121
    %p123 = scmp.ne.s32.totalorder %s112, %s113
    %p124 = scmp.eq.s32.totalorder %s15, 0
    %p125 = por %p123, %p124
    %p126 = scmp.ne.s32.totalorder %s112, %s113
    %p127 = scmp.eq.s32.totalorder %s16, 1
    %p128 = por %p126, %p127
    %p130 = scmp.ne.s32.totalorder %s113, %s129
    %p131 = scmp.eq.s32.totalorder %s16, 0
    %p132 = por %p130, %p131
    %p133 = scmp.le.s32.totalorder 1, %s10
    %p134 = scmp.lt.s32.totalorder %s10, 3
    %p135 = pnand %p133, %p134
    %p136 = pneg %p135
    // Predicated region
    $region9: #{transition_forward.1} parent=5 // pred_check
      _
    $region10: #{transition_forward.1} parent=5 // pred_check_branch
      %138 = sbr.rel (%p135) target = $region12
    $region11: #{transition_forward.1} parent=5 // pred_region
      %s139 = ssub.s32 %s10, 1
      // Predicated region
      $region13: #{transition_forward.1} parent=11 // pred_check
        %p140 = pneg %p57
      $region14: #{transition_forward.1} parent=11 // pred_check_branch
        %142 = sbr.rel (%p140) target = $region16
      $region15: #{transition_forward.1} parent=11 // pred_region
        _
      $region16: #{transition_forward.1} parent=11 // pred_fallthru
        _
      // Predicated region
      $region17: #{transition_forward.1} parent=11 // pred_check
        %p143 = pneg %p78
      $region18: #{transition_forward.1} parent=11 // pred_check_branch
        %145 = sbr.rel (%p143) target = $region20
      $region19: #{transition_forward.1} parent=11 // pred_region
        _
      $region20: #{transition_forward.1} parent=11 // pred_fallthru
        _
      // Predicated region
      $region21: #{transition_forward.1} parent=11 // pred_check
        %p146 = pneg %p99
      $region22: #{transition_forward.1} parent=11 // pred_check_branch
        %148 = sbr.rel (%p146) target = $region24
      $region23: #{transition_forward.1} parent=11 // pred_region
        _
      $region24: #{transition_forward.1} parent=11 // pred_fallthru
        _
    $region12: #{transition_forward.1} parent=5 // pred_fallthru
      _
    %p149 = scmp.lt.s32.totalorder %s10, 2
    // Predicated region
    $region25: #{transition_forward.1} parent=5 // pred_check
      %p150 = pneg %p149
    $region26: #{transition_forward.1} parent=5 // pred_check_branch
      %152 = sbr.rel (%p150) target = $region28
    $region27: #{transition_forward.1} parent=5 // pred_region
      // Predicated region
      $region29: #{transition_forward.1} parent=27 // pred_check
        %p153 = pneg %p30
      $region30: #{transition_forward.1} parent=27 // pred_check_branch
        %155 = sbr.rel (%p153) target = $region32
      $region31: #{transition_forward.1} parent=27 // pred_region
        %p156 = scmp.lt.s32.totalorder %s10, 1
        %s157 = scalar_select %p156, %s10, 1
        %s158 = smul.addr %s157, 8
        %s159 = smul.addr %s158, 4
        %s160 = scalar_lea.vmem %s0, %s159
      $region32: #{transition_forward.1} parent=27 // pred_fallthru
        _
    $region28: #{transition_forward.1} parent=5 // pred_fallthru
      _
    %p161 = scmp.le.s32.totalorder 1, %s10
    %p162 = scmp.lt.s32.totalorder %s10, 3
    %p163 = pnand %p161, %p162
    %p164 = pneg %p163
    // Predicated region
    $region33: #{transition_forward.1} parent=5 // pred_check
      _
    $region34: #{transition_forward.1} parent=5 // pred_check_branch
      %166 = sbr.rel (%p163) target = $region36
    $region35: #{transition_forward.1} parent=5 // pred_region
      %s167 = ssub.s32 %s10, 1
      %p168 = scmp.lt.s32.totalorder %s15, 1
      %s169 = scalar_select %p168, %s15, 1
      %s170 = smul.addr %s169, 8
      %s171 = smul.addr %s170, 4
      %s172 = scalar_lea.vmem %s0, %s171
      %p173 = pneg %p36
      %p174 = pneg %p33
      %p175 = pneg %p57
      %p176 = pneg %p54
      %p177 = pneg %p78
      %p178 = pneg %p75
      %p179 = pneg %p99
      %p180 = pneg %p96
      %p181 = pneg %p125
      %p182 = pneg %p122
      %p183 = scmp.lt.s32.totalorder %s15, 1
      %s184 = scalar_select %p183, %s15, 1
      %s185 = smul.addr %s184, 2
      %s186 = smul.addr %s185, 8
      %s187 = scalar_lea.vmem %s4, %s186
      %p188 = scmp.lt.s32.totalorder %s15, 1
      %s189 = scalar_select %p188, %s15, 1
      %s190 = smul.addr %s189, 8
      %s191 = smul.addr %s190, 4
      %s192 = scalar_lea.vmem %s0, %s191
      %p193 = scmp.lt.s32.totalorder %s15, 1
      %s194 = scalar_select %p193, %s15, 1
      %s195 = smul.addr %s194, 2
      %s196 = smul.addr %s195, 8
      %s197 = scalar_lea.vmem %s4, %s196
      %v199 = vld [vmem:[%s1] sm:$0xf]
      %v200 = vld [vmem:[%s1 + $0x4] sm:$0xf]
      %v201 = vld [vmem:[%s3] sm:$0xf]
      %v202 = vld [vmem:[%s3 + $0x4] sm:$0xf]
      %v203 = vld [vmem:[%s3 + $0x8] sm:$0xf]
      %v204 = vld [vmem:[%s3 + $0xc] sm:$0xf]
      %v205 = vld [vmem:[%s3 + $0x10] sm:$0xf]
      %v206 = vld [vmem:[%s3 + $0x14] sm:$0xf]
      %v207 = vld [vmem:[%s3 + $0x18] sm:$0xf]
      %v208 = vld [vmem:[%s3 + $0x1c] sm:$0xf]
      %v209 = vld [vmem:[%s3 + $0x20] sm:$0xf]
      %v210 = vld [vmem:[%s3 + $0x24] sm:$0xf]
      %v211 = vld [vmem:[%s3 + $0x28] sm:$0xf]
      %v212 = vld [vmem:[%s3 + $0x2c] sm:$0xf]
      %v213 = vld [vmem:[%s3 + $0x30] sm:$0xf]
      %v214 = vld [vmem:[%s3 + $0x34] sm:$0xf]
      %v215 = vld [vmem:[%s3 + $0x38] sm:$0xf]
      %v216 = vld [vmem:[%s3 + $0x3c] sm:$0xf]
      %v217 = vld [vmem:[%s3 + $0x40] sm:$0xf]
      %v218 = vld [vmem:[%s3 + $0x44] sm:$0xf]
      %v219 = vld [vmem:[%s3 + $0x48] sm:$0xf]
      %v220 = vld [vmem:[%s3 + $0x4c] sm:$0xf]
      %v221 = vld [vmem:[%s3 + $0x50] sm:$0xf]
      %v222 = vld [vmem:[%s3 + $0x54] sm:$0xf]
      %v223 = vld [vmem:[%s3 + $0x58] sm:$0xf]
      %v224 = vld [vmem:[%s3 + $0x5c] sm:$0xf]
      %v225 = vld [vmem:[%s3 + $0x60] sm:$0xf]
      %v226 = vld [vmem:[%s3 + $0x64] sm:$0xf]
      %v227 = vld [vmem:[%s3 + $0x68] sm:$0xf]
      %v228 = vld [vmem:[%s3 + $0x6c] sm:$0xf]
      %v229 = vld [vmem:[%s3 + $0x70] sm:$0xf]
      %v230 = vld [vmem:[%s3 + $0x74] sm:$0xf]
      %v231 = vld [vmem:[%s3 + $0x78] sm:$0xf]
      %v232 = vld [vmem:[%s3 + $0x7c] sm:$0xf]
      %v233 = vld [vmem:[%s2] sm:$0xff]
      %v234 = vld [vmem:[%s2 + $0x8] sm:$0xff]
      %v235 = vld [vmem:[%s192] sm:$0xff]
      %v236 = vld [vmem:[%s192 + $0x8] sm:$0xff]
      %v237 = vld [vmem:[%s192 + $0x10] sm:$0xff]
      %v238 = vld [vmem:[%s192 + $0x18] sm:$0xff]
      %v241 = vunpack.c.l.b16 %v199
      %v242 = vunpack.c.l.b16 %v200
      %v243 = vpack.c.b16 %v242, %v241
      %v248 = vunpack.c.l.b16 %v235
      %v249 = vunpack.c.h.b16 %v235
      %v250 = vunpack.c.l.b16 %v236
      %v251 = vunpack.c.h.b16 %v236
      %v252 = vunpack.c.l.b16 %v237
      %v253 = vunpack.c.h.b16 %v237
      %v254 = vunpack.c.l.b16 %v238
      %v255 = vunpack.c.h.b16 %v238
      %v256 = vpack.c.b16 %v250, %v248
      %v257 = vpack.c.b16 %v251, %v249
      %v258 = vpack.c.b16 %v254, %v252
      %v259 = vpack.c.b16 %v255, %v253
      %vm264 = vcmask 261120
      %v266 = vsel %vm264, %v243, 0
      %268 = vmatprep.subr.bf16.mxu0 0
      %269 = vmatpush1.bf16.msra.mxu0 0
      %270 = vmatprep.subr.bf16.mxu0 0
      %271 = vmatpush1.bf16.msra.mxu0 0
      %272 = vmatprep.subr.bf16.mxu0 0
      %273 = vmatpush1.bf16.msra.mxu0 0
      %274 = vmatprep.subr.bf16.mxu0 0
      %275 = vmatpush1.bf16.msra.mxu0 0
      %276 = vmatprep.subr.bf16.mxu0 0
      %277 = vmatpush1.bf16.msra.mxu0 0
      %278 = vmatprep.subr.bf16.mxu0 0
      %279 = vmatpush1.bf16.msra.mxu0 0
      %280 = vmatprep.subr.bf16.mxu0 %v259
      %281 = vmatpush1.bf16.msra.mxu0 %v258
      %282 = vmatprep.subr.bf16.mxu0 %v257
      %283 = vmatpush1.bf16.msra.mxu0 %v256
      %284 = vmatprep.subr.bf16.mxu0 0
      %285 = vmatpush2.bf16.msra.mxu0 0
      %286 = vmatprep.subr.bf16.mxu0 0
      %287 = vmatpush2.bf16.msra.mxu0 0
      %288 = vmatprep.subr.bf16.mxu0 0
      %289 = vmatpush2.bf16.msra.mxu0 0
      %290 = vmatprep.subr.bf16.mxu0 0
      %291 = vmatpush2.bf16.msra.mxu0 0
      %292 = vmatprep.subr.bf16.mxu0 0
      %293 = vmatpush2.bf16.msra.mxu0 0
      %294 = vmatprep.subr.bf16.mxu0 0
      %295 = vmatpush2.bf16.msra.mxu0 0
      %296 = vmatprep.subr.bf16.mxu0 0
      %297 = vmatpush2.bf16.msra.mxu0 0
      %298 = vmatprep.subr.bf16.mxu0 0
      %299 = vmatpush2.bf16.msra.mxu0 0
      %300 = vmatprep.mubr.bf16.mxu0 0
      %301 = vmatmul.mubr.bf16.gmra.mxu0 %v266
      %v302 = vpop.f32.mrf.mxu0
      %v303 = vadd.f32 0.0, %v302
      %v304 = vpop.f32.mrf.mxu0
      %v305 = vadd.f32 0.0, %v304
      %v306 = vpop.f32.mrf.mxu0
      %v307 = vadd.f32 0.0, %v306
      %v308 = vpop.f32.mrf.mxu0
      %v309 = vadd.f32 0.0, %v308
      %310 = vdwg.mxu0
      %v311 = vpack.c.bf16 %v307, %v303
      %v312 = vpack.c.bf16 %v309, %v305
      %314 = vset.pattern.permute.xlu0 0
      %315 = vperm.xlu0 %314, %v233
      %v316 = vpop.permute.xlu0 %315
      %319 = vset.pattern.permute.xlu0 0
      %320 = vperm.xlu0 %319, %v234
      %v321 = vpop.permute.xlu0 %320
      %v355 = vunpack.c.l.b16 %v201
      %v356 = vunpack.c.l.b16 %v202
      %v357 = vunpack.c.l.b16 %v203
      %v358 = vunpack.c.l.b16 %v204
      %v359 = vunpack.c.l.b16 %v205
      %v360 = vunpack.c.l.b16 %v206
      %v361 = vunpack.c.l.b16 %v207
      %v362 = vunpack.c.l.b16 %v208
      %v363 = vunpack.c.l.b16 %v209
      %v364 = vunpack.c.l.b16 %v210
      %v365 = vunpack.c.l.b16 %v211
      %v366 = vunpack.c.l.b16 %v212
      %v367 = vunpack.c.l.b16 %v213
      %v368 = vunpack.c.l.b16 %v214
      %v369 = vunpack.c.l.b16 %v215
      %v370 = vunpack.c.l.b16 %v216
      %v371 = vunpack.c.l.b16 %v217
      %v372 = vunpack.c.l.b16 %v218
      %v373 = vunpack.c.l.b16 %v219
      %v374 = vunpack.c.l.b16 %v220
      %v375 = vunpack.c.l.b16 %v221
      %v376 = vunpack.c.l.b16 %v222
      %v377 = vunpack.c.l.b16 %v223
      %v378 = vunpack.c.l.b16 %v224
      %v379 = vunpack.c.l.b16 %v225
      %v380 = vunpack.c.l.b16 %v226
      %v381 = vunpack.c.l.b16 %v227
      %v382 = vunpack.c.l.b16 %v228
      %v383 = vunpack.c.l.b16 %v229
      %v384 = vunpack.c.l.b16 %v230
      %v385 = vunpack.c.l.b16 %v231
      %v386 = vunpack.c.l.b16 %v232
      %v387 = vpack.c.b16 %v356, %v355
      %v388 = vpack.c.b16 %v358, %v357
      %v389 = vpack.c.b16 %v360, %v359
      %v390 = vpack.c.b16 %v362, %v361
      %v391 = vpack.c.b16 %v364, %v363
      %v392 = vpack.c.b16 %v366, %v365
      %v393 = vpack.c.b16 %v368, %v367
      %v394 = vpack.c.b16 %v370, %v369
      %v395 = vpack.c.b16 %v372, %v371
      %v396 = vpack.c.b16 %v374, %v373
      %v397 = vpack.c.b16 %v376, %v375
      %v398 = vpack.c.b16 %v378, %v377
      %v399 = vpack.c.b16 %v380, %v379
      %v400 = vpack.c.b16 %v382, %v381
      %v401 = vpack.c.b16 %v384, %v383
      %v402 = vpack.c.b16 %v386, %v385
      %419 = vmatprep.subr.bf16.mxu0 0
      %420 = vmatpush1.bf16.msra.mxu0 %v394
      %421 = vmatprep.subr.bf16.mxu0 0
      %422 = vmatpush1.bf16.msra.mxu0 %v393
      %423 = vmatprep.subr.bf16.mxu0 0
      %424 = vmatpush1.bf16.msra.mxu0 %v392
      %425 = vmatprep.subr.bf16.mxu0 0
      %426 = vmatpush1.bf16.msra.mxu0 %v391
      %427 = vmatprep.subr.bf16.mxu0 0
      %428 = vmatpush1.bf16.msra.mxu0 %v390
      %429 = vmatprep.subr.bf16.mxu0 0
      %430 = vmatpush1.bf16.msra.mxu0 %v389
      %431 = vmatprep.subr.bf16.mxu0 0
      %432 = vmatpush1.bf16.msra.mxu0 %v388
      %433 = vmatprep.subr.bf16.mxu0 0
      %434 = vmatpush1.bf16.msra.mxu0 %v387
      %435 = vmatprep.subr.bf16.mxu0 0
      %436 = vmatpush2.bf16.msra.mxu0 %v402
      %437 = vmatprep.subr.bf16.mxu0 0
      %438 = vmatpush2.bf16.msra.mxu0 %v401
      %439 = vmatprep.subr.bf16.mxu0 0
      %440 = vmatpush2.bf16.msra.mxu0 %v400
      %441 = vmatprep.subr.bf16.mxu0 0
      %442 = vmatpush2.bf16.msra.mxu0 %v399
      %443 = vmatprep.subr.bf16.mxu0 0
      %444 = vmatpush2.bf16.msra.mxu0 %v398
      %445 = vmatprep.subr.bf16.mxu0 0
      %446 = vmatpush2.bf16.msra.mxu0 %v397
      %447 = vmatprep.subr.bf16.mxu0 0
      %448 = vmatpush2.bf16.msra.mxu0 %v396
      %449 = vmatprep.subr.bf16.mxu0 0
      %450 = vmatpush2.bf16.msra.mxu0 %v395
      %451 = vmatprep.mubr.bf16.mxu0 %v312
      %452 = vmatmul.mubr.bf16.gmra.mxu0 %v311
      %v453 = vpop.f32.mrf.mxu0
      %v454 = vadd.f32 %v316, %v453
      %v455 = vpop.f32.mrf.mxu0
      %v456 = vpop.f32.mrf.mxu0
      %v457 = vadd.f32 %v321, %v456
      %v458 = vpop.f32.mrf.mxu0
      %459 = vdwg.mxu0
      %vm460 = vcmask 523264
      %461 = vst.msk [vmem:[%s197] sm:$0xff] %vm460, %v454
      %462 = vst.msk [vmem:[%s197 + $0x8] sm:$0xff] %vm460, %v457
      %p463 = scmp.lt.s32.totalorder %s15, 1
      %s464 = scalar_select %p463, %s15, 1
      %s465 = smul.addr %s464, 2
      %s466 = smul.addr %s465, 8
      %s467 = scalar_lea.vmem %s4, %s466
      // Predicated region
      $region37: #{transition_forward.1} parent=35 // pred_check
        %p468 = pneg %p122
      $region38: #{transition_forward.1} parent=35 // pred_check_branch
        %470 = sbr.rel (%p468) target = $region40
      $region39: #{transition_forward.1} parent=35 // pred_region
        _
      $region40: #{transition_forward.1} parent=35 // pred_fallthru
        _
    $region36: #{transition_forward.1} parent=5 // pred_fallthru
      _
    %p471 = scmp.le.s32.totalorder 2, %s10
    // Predicated region
    $region41: #{transition_forward.1} parent=5 // pred_check
      %p472 = pneg %p471
    $region42: #{transition_forward.1} parent=5 // pred_check_branch
      %474 = sbr.rel (%p472) target = $region44
    $region43: #{transition_forward.1} parent=5 // pred_region
      %s475 = ssub.s32 %s10, 2
      // Predicated region
      $region45: #{transition_forward.1} parent=43 // pred_check
        %p476 = pneg %p128
      $region46: #{transition_forward.1} parent=43 // pred_check_branch
        %478 = sbr.rel (%p476) target = $region48
      $region47: #{transition_forward.1} parent=43 // pred_region
        %p479 = scmp.lt.s32.totalorder %s16, 1
        %s480 = scalar_select %p479, %s16, 1
        %s481 = smul.addr %s480, 2
        %s482 = smul.addr %s481, 8
        %s483 = scalar_lea.vmem %s4, %s482
      $region48: #{transition_forward.1} parent=43 // pred_fallthru
        _
    $region44: #{transition_forward.1} parent=5 // pred_fallthru
      _
  $region6: #{transition_forward.1} parent=0 // loop_footer
    %s14 = sadd.s32 1, %s10
  $region7: #{transition_forward.1} parent=0 // loop_footer_branch
    %9 = sbr.rel target = $region3
  $region8: #{transition_forward.1} parent=0 // loop_exit
    _

</llo_original>
